<compile_context>
chip_gen: v5e
topology: v5e:2x2
jax: 0.10.0
libtpu: 0.0.40
codegen_flags: <defaults>
</compile_context>

<pallas_src>
import functools
import math

import jax
import jax.numpy as jnp
from jax.experimental import pallas as pl
from jax.experimental.pallas import tpu as pltpu


def _attn_kernel(mask_ref, q_ref, k_ref, v_ref, wfc_ref, b_ref, out_ref,
                 m_scr, l_scr, acc_scr, cat_scr, *, scale, heads, head_dim):
    """One grid step = (batch n, query tile qi, key tile ki); all heads fused.

    mask_ref: (TQ, TK) f32 additive bias (0 or -1e20)
    q_ref:    (H, TQ, D) bf16   (pre-projected)
    k_ref:    (H, TK, D) bf16   (pre-projected)
    v_ref:    (H, TK, D) bf16   (pre-projected)
    wfc_ref:  (E, Ep)    bf16   fc_out.weight^T, padded to lane-dense Ep
    b_ref:    (1, Ep)    f32    fc_out.bias, padded
    out_ref:  (TQ, Ep)   f32    output tile (written at the last ki step)
    scratch:  m/l (H, TQ, 1) f32, acc (H, TQ, D) f32, cat (TQ, E) f32
    """
    ki = pl.program_id(2)

    @pl.when(ki == 0)
    def _():
        m_scr[...] = jnp.full(m_scr.shape, -jnp.inf, jnp.float32)
        l_scr[...] = jnp.zeros(l_scr.shape, jnp.float32)
        acc_scr[...] = jnp.zeros(acc_scr.shape, jnp.float32)

    q = q_ref[...]                                   # (H, TQ, D) bf16
    k = k_ref[...]                                   # (H, TK, D) bf16
    v = v_ref[...]                                   # (H, TK, D) bf16

    # s[h, q, k] = <q[h, q, :], k[h, k, :]>  — contract D of both operands,
    # batched over heads; no transpose of K is materialized.
    s = jnp.einsum("hqd,hkd->hqk", q, k,
                   preferred_element_type=jnp.float32)       # (H, TQ, TK) f32

    # additive mask bias (broadcast over heads) + 1/sqrt(embed_size) scaling
    logits = s * jnp.float32(scale) + mask_ref[...][None, :, :]

    # online (flash-style) softmax update, all in f32
    m_prev = m_scr[...]                              # (H, TQ, 1)
    m_new = jnp.maximum(m_prev, jnp.max(logits, axis=-1, keepdims=True))
    alpha = jnp.exp(m_prev - m_new)                  # (H, TQ, 1)
    p = jnp.exp(logits - m_new)                      # (H, TQ, TK)
    l_scr[...] = alpha * l_scr[...] + jnp.sum(p, axis=-1, keepdims=True)
    pv = jnp.einsum("hqk,hkd->hqd", p.astype(v.dtype), v,
                    preferred_element_type=jnp.float32)      # (H, TQ, D) f32
    acc_scr[...] = alpha * acc_scr[...] + pv
    m_scr[...] = m_new

    @pl.when(ki == pl.num_programs(2) - 1)
    def _():
        # normalize (EUP reciprocal, not a VALU divide)
        inv_l = pl.reciprocal(l_scr[...], approx=True)       # (H, TQ, 1)
        head_out = acc_scr[...] * inv_l                      # (H, TQ, D) f32

        # concatenate heads along the feature axis into a (TQ, E) buffer
        for h in range(heads):                               # static, unrolled
            cat_scr[:, h * head_dim:(h + 1) * head_dim] = head_out[h]

        # single fc_out matmul, K = embed_size, lane-dense Ep output
        out = jnp.dot(cat_scr[...].astype(jnp.bfloat16), wfc_ref[...],
                      preferred_element_type=jnp.float32)    # (TQ, Ep)
        out_ref[...] = out + b_ref[...]


def self_attention(values, keys, query, mask, params, *, embed_size, heads):
    """values/keys/query: (N, L, embed_size) f32; mask: (N, 1, Lq, Lk) int."""
    N, Lq, E = query.shape
    Lk = keys.shape[1]
    assert E == embed_size and values.shape[1] == Lk
    H = heads
    D = embed_size // heads
    assert D * heads == embed_size

    Ep = ((E + 127) // 128) * 128                    # lane-dense output width
    TQ = Lq if Lq <= 128 else 128
    TK = Lk if Lk <= 128 else 128
    assert Lq % TQ == 0 and Lk % TK == 0

    # --- Q/K/V projections hoisted to XLA (one big contraction each), then
    #     laid out (N, H, L, D) and cast to bf16 for the kernel.
    def project(x, w):                               # nn.Linear: y = x @ W.T
        L = x.shape[1]
        xh = x.reshape(N, L, H, D)
        yh = jnp.einsum("nlhd,od->nlho", xh, w)
        return jnp.transpose(yh, (0, 2, 1, 3)).astype(jnp.bfloat16)

    q = project(query, params["wq"])
    k = project(keys, params["wk"])
    v = project(values, params["wv"])

    # additive mask bias (0 where visible, -1e20 where masked)
    mask_bias = jnp.where(mask == 0, jnp.float32(-1e20),
                          jnp.float32(0.0)).astype(jnp.float32)

    # fc_out weight^T padded to (E, Ep) bf16; bias padded to (1, Ep) f32
    wfc_t = params["wfc"].T                          # (E, E)
    wfc_p = jnp.zeros((E, Ep), jnp.float32).at[:, :E].set(wfc_t)
    wfc_p = wfc_p.astype(jnp.bfloat16)
    bfc_p = jnp.zeros((1, Ep), jnp.float32).at[0, :E].set(params["bfc"])

    scale = 1.0 / math.sqrt(embed_size)
    kernel = functools.partial(_attn_kernel, scale=scale, heads=H, head_dim=D)

    out_p = pl.pallas_call(
        kernel,
        out_shape=jax.ShapeDtypeStruct((N, Lq, Ep), jnp.float32),
        grid_spec=pltpu.PrefetchScalarGridSpec(
            num_scalar_prefetch=0,
            grid=(N, Lq // TQ, Lk // TK),
            in_specs=[
                # mask bias (N, 1, Lq, Lk)
                pl.BlockSpec((pl.Squeezed(), pl.Squeezed(), TQ, TK),
                             lambda n, qi, ki: (n, 0, qi, ki)),
                # q (N, H, Lq, D)
                pl.BlockSpec((pl.Squeezed(), H, TQ, D),
                             lambda n, qi, ki: (n, 0, qi, 0)),
                # k, v (N, H, Lk, D)
                pl.BlockSpec((pl.Squeezed(), H, TK, D),
                             lambda n, qi, ki: (n, 0, ki, 0)),
                pl.BlockSpec((pl.Squeezed(), H, TK, D),
                             lambda n, qi, ki: (n, 0, ki, 0)),
                # fc_out weight^T (E, Ep) and bias (1, Ep): resident
                pl.BlockSpec((E, Ep), lambda n, qi, ki: (0, 0)),
                pl.BlockSpec((1, Ep), lambda n, qi, ki: (0, 0)),
            ],
            # output block constant across the (last, "arbitrary") ki axis
            out_specs=pl.BlockSpec((pl.Squeezed(), TQ, Ep),
                                   lambda n, qi, ki: (n, qi, 0)),
            scratch_shapes=[
                pltpu.VMEM((H, TQ, 1), jnp.float32),   # running max
                pltpu.VMEM((H, TQ, 1), jnp.float32),   # running denom
                pltpu.VMEM((H, TQ, D), jnp.float32),   # running numerator
                pltpu.VMEM((TQ, E), jnp.float32),      # concatenated heads
            ],
        ),
        compiler_params=pltpu.CompilerParams(
            dimension_semantics=("parallel", "parallel", "arbitrary"),
            vmem_limit_bytes=32 * 1024 * 1024),
    )(mask_bias, q, k, v, wfc_p, bfc_p)

    return out_p[..., :E]


def reference(values, keys, query, mask, params, *, embed_size, heads):
    """Pure-JAX f32 transcription of the PyTorch forward (correctness check)."""
    N, Lq, E = query.shape
    Lk = keys.shape[1]
    Lv = values.shape[1]
    D = E // heads
    v = values.reshape(N, Lv, heads, D) @ params["wv"].T
    k = keys.reshape(N, Lk, heads, D) @ params["wk"].T
    q = query.reshape(N, Lq, heads, D) @ params["wq"].T
    energy = jnp.einsum("nqhd,nkhd->nhqk", q, k)
    energy = jnp.where(mask == 0, jnp.float32(-1e20), energy)
    attn = jax.nn.softmax(energy / math.sqrt(embed_size), axis=3)
    out = jnp.einsum("nhql,nlhd->nqhd", attn, v).reshape(N, Lq, heads * D)
    return out @ params["wfc"].T + params["bfc"]


if __name__ == "__main__":
    embed_size, heads = 32, 4
    D = embed_size // heads
    N, Lq, Lk = 2, 8, 8

    key = jax.random.PRNGKey(0)
    ks = jax.random.split(key, 9)

    query = jax.random.normal(ks[0], (N, Lq, embed_size), dtype=jnp.float32)
    keys_in = jax.random.normal(ks[1], (N, Lk, embed_size), dtype=jnp.float32)
    values_in = jax.random.normal(ks[2], (N, Lk, embed_size), dtype=jnp.float32)
    mask = (jax.random.uniform(ks[3], (N, 1, Lq, Lk)) > 0.25).astype(jnp.int32)
    # guarantee at least one visible key per query row (avoid degenerate rows)
    mask = mask.at[..., 0].set(1)

    # Deterministic synthetic parameters (shapes from the module __init__).
    params = {
        "wq": jax.random.normal(ks[4], (D, D), dtype=jnp.float32) / math.sqrt(D),
        "wk": jax.random.normal(ks[5], (D, D), dtype=jnp.float32) / math.sqrt(D),
        "wv": jax.random.normal(ks[6], (D, D), dtype=jnp.float32) / math.sqrt(D),
        "wfc": jax.random.normal(ks[7], (embed_size, heads * D), dtype=jnp.float32)
               / math.sqrt(embed_size),
        "bfc": jax.random.normal(ks[8], (embed_size,), dtype=jnp.float32) * 0.1,
    }

    out = self_attention(values_in, keys_in, query, mask, params,
                         embed_size=embed_size, heads=heads)
    out = jax.block_until_ready(out)

    ref = reference(values_in, keys_in, query, mask, params,
                    embed_size=embed_size, heads=heads)
    max_err = float(jnp.max(jnp.abs(out - ref)))
    assert out.shape == (N, Lq, embed_size)
    # bf16 MXU operands + approx reciprocal vs f32 reference
    assert max_err < 5e-2, f"mismatch vs reference: {max_err}"

    print("KERNEL_OK")
</pallas_src>

<mosaic_0001>
module attributes {stable_mosaic.version = 11 : i64} {
  func.func @_attn_kernel(%arg0: i32, %arg1: i32, %arg2: i32, %arg3: memref<1x1x8x8xf32, #tpu.memory_space<vmem>>, %arg4: memref<1x4x8x8xbf16, #tpu.memory_space<vmem>>, %arg5: memref<1x4x8x8xbf16, #tpu.memory_space<vmem>>, %arg6: memref<1x4x8x8xbf16, #tpu.memory_space<vmem>>, %arg7: memref<32x128xbf16, #tpu.memory_space<vmem>>, %arg8: memref<1x128xf32, #tpu.memory_space<vmem>>, %arg9: memref<1x8x128xf32, #tpu.memory_space<vmem>>, %arg10: memref<4x8x1xf32, #tpu.memory_space<vmem>>, %arg11: memref<4x8x1xf32, #tpu.memory_space<vmem>>, %arg12: memref<4x8x8xf32, #tpu.memory_space<vmem>>, %arg13: memref<8x32xf32, #tpu.memory_space<vmem>>) attributes {dimension_semantics = [#tpu.dimension_semantics<parallel>, #tpu.dimension_semantics<parallel>, #tpu.dimension_semantics<arbitrary>], iteration_bounds = array<i64: 2, 1, 1>, scalar_prefetch = 0 : i64, scratch_operands = 4 : i64, tpu.core_type = #tpu.core_type<tc>, window_params = [{transform_indices = @transform_0, window_bounds = array<i64: 1, 1, 8, 8>}, {transform_indices = @transform_1, window_bounds = array<i64: 1, 4, 8, 8>}, {transform_indices = @transform_2, window_bounds = array<i64: 1, 4, 8, 8>}, {transform_indices = @transform_3, window_bounds = array<i64: 1, 4, 8, 8>}, {pipeline_mode = #tpu.pipeline_mode<synchronous>, transform_indices = @transform_4, window_bounds = array<i64: 32, 128>}, {pipeline_mode = #tpu.pipeline_mode<synchronous>, transform_indices = @transform_5, window_bounds = array<i64: 1, 128>}, {transform_indices = @transform_6, window_bounds = array<i64: 1, 8, 128>}]} {
    %c0_i32 = arith.constant 0 : i32
    %0 = arith.cmpi eq, %arg2, %c0_i32 : i32
    %1 = arith.extui %0 : i1 to i32
    %c0_i32_0 = arith.constant 0 : i32
    %2 = arith.cmpi ne, %1, %c0_i32_0 : i32
    scf.if %2 {
      %cst_40 = arith.constant 0xFF800000 : f32
      %43 = vector.broadcast %cst_40 : f32 to vector<4x8x1xf32>
      %c0_41 = arith.constant 0 : index
      %c0_42 = arith.constant 0 : index
      %c0_43 = arith.constant 0 : index
      %44 = vector.load %arg10[%c0_41, %c0_42, %c0_43] : memref<4x8x1xf32, #tpu.memory_space<vmem>>, vector<4x8x1xf32>
      tpu.vector_store %arg10[%c0_41, %c0_42, %c0_43], %43 {strides = array<i32>} : memref<4x8x1xf32, #tpu.memory_space<vmem>>, vector<4x8x1xf32>,
      %cst_44 = arith.constant 0.000000e+00 : f32
      %45 = vector.broadcast %cst_44 : f32 to vector<4x8x1xf32>
      %c0_45 = arith.constant 0 : index
      %c0_46 = arith.constant 0 : index
      %c0_47 = arith.constant 0 : index
      %46 = vector.load %arg11[%c0_45, %c0_46, %c0_47] : memref<4x8x1xf32, #tpu.memory_space<vmem>>, vector<4x8x1xf32>
      tpu.vector_store %arg11[%c0_45, %c0_46, %c0_47], %45 {strides = array<i32>} : memref<4x8x1xf32, #tpu.memory_space<vmem>>, vector<4x8x1xf32>,
      %cst_48 = arith.constant 0.000000e+00 : f32
      %47 = vector.broadcast %cst_48 : f32 to vector<4x8x8xf32>
      %c0_49 = arith.constant 0 : index
      %c0_50 = arith.constant 0 : index
      %c0_51 = arith.constant 0 : index
      %48 = vector.load %arg12[%c0_49, %c0_50, %c0_51] : memref<4x8x8xf32, #tpu.memory_space<vmem>>, vector<4x8x8xf32>
      tpu.vector_store %arg12[%c0_49, %c0_50, %c0_51], %47 {strides = array<i32>} : memref<4x8x8xf32, #tpu.memory_space<vmem>>, vector<4x8x8xf32>,
    } else {
    }
    %c0 = arith.constant 0 : index
    %c0_1 = arith.constant 0 : index
    %c0_2 = arith.constant 0 : index
    %c0_3 = arith.constant 0 : index
    %3 = vector.load %arg4[%c0, %c0_1, %c0_2, %c0_3] : memref<1x4x8x8xbf16, #tpu.memory_space<vmem>>, vector<1x4x8x8xbf16>
    %4 = vector.shape_cast %3 : vector<1x4x8x8xbf16> to vector<4x8x8xbf16>
    %c0_4 = arith.constant 0 : index
    %c0_5 = arith.constant 0 : index
    %c0_6 = arith.constant 0 : index
    %c0_7 = arith.constant 0 : index
    %5 = vector.load %arg5[%c0_4, %c0_5, %c0_6, %c0_7] : memref<1x4x8x8xbf16, #tpu.memory_space<vmem>>, vector<1x4x8x8xbf16>
    %6 = vector.shape_cast %5 : vector<1x4x8x8xbf16> to vector<4x8x8xbf16>
    %c0_8 = arith.constant 0 : index
    %c0_9 = arith.constant 0 : index
    %c0_10 = arith.constant 0 : index
    %c0_11 = arith.constant 0 : index
    %7 = vector.load %arg6[%c0_8, %c0_9, %c0_10, %c0_11] : memref<1x4x8x8xbf16, #tpu.memory_space<vmem>>, vector<1x4x8x8xbf16>
    %8 = vector.shape_cast %7 : vector<1x4x8x8xbf16> to vector<4x8x8xbf16>
    "tpu.trace_start"() <{level = 10 : i32, message = "hqd,hkd->hqk"}> : () -> ()
    %cst = arith.constant dense<0.000000e+00> : vector<4x8x8xf32>
    %9 = tpu.matmul %4, %6, %cst {dimension_numbers = #tpu.dot_dimension_numbers<[2], [2], [1], [1], [0, 0, 0, 1, 1, 1], [0], [0]>} : vector<4x8x8xbf16>, vector<4x8x8xbf16>, vector<4x8x8xf32> -> vector<4x8x8xf32>
    "tpu.trace_stop"() : () -> ()
    %cst_12 = arith.constant 0.176776692 : f32
    %10 = vector.broadcast %cst_12 : f32 to vector<4x8x8xf32>
    %11 = arith.mulf %9, %10 : vector<4x8x8xf32>
    %c0_13 = arith.constant 0 : index
    %c0_14 = arith.constant 0 : index
    %c0_15 = arith.constant 0 : index
    %c0_16 = arith.constant 0 : index
    %12 = vector.load %arg3[%c0_13, %c0_14, %c0_15, %c0_16] : memref<1x1x8x8xf32, #tpu.memory_space<vmem>>, vector<1x1x8x8xf32>
    %13 = vector.shape_cast %12 : vector<1x1x8x8xf32> to vector<8x8xf32>
    %14 = vector.shape_cast %13 : vector<8x8xf32> to vector<1x8x8xf32>
    %15 = vector.broadcast %14 : vector<1x8x8xf32> to vector<4x8x8xf32>
    %16 = arith.addf %11, %15 : vector<4x8x8xf32>
    %c0_17 = arith.constant 0 : index
    %c0_18 = arith.constant 0 : index
    %c0_19 = arith.constant 0 : index
    %17 = vector.load %arg10[%c0_17, %c0_18, %c0_19] : memref<4x8x1xf32, #tpu.memory_space<vmem>>, vector<4x8x1xf32>
    %cst_20 = arith.constant dense<0xFF800000> : vector<4x8xf32>
    %18 = vector.multi_reduction <maximumf>, %16, %cst_20 [2] : vector<4x8x8xf32> to vector<4x8xf32>
    %19 = vector.shape_cast %18 : vector<4x8xf32> to vector<4x8x1xf32>
    %20 = arith.maximumf %17, %19 : vector<4x8x1xf32>
    %21 = arith.subf %17, %20 : vector<4x8x1xf32>
    %22 = math.exp %21 : vector<4x8x1xf32>
    %23 = vector.broadcast %20 : vector<4x8x1xf32> to vector<4x8x8xf32>
    %24 = arith.subf %16, %23 : vector<4x8x8xf32>
    %25 = math.exp %24 : vector<4x8x8xf32>
    %c0_21 = arith.constant 0 : index
    %c0_22 = arith.constant 0 : index
    %c0_23 = arith.constant 0 : index
    %26 = vector.load %arg11[%c0_21, %c0_22, %c0_23] : memref<4x8x1xf32, #tpu.memory_space<vmem>>, vector<4x8x1xf32>
    %27 = arith.mulf %22, %26 : vector<4x8x1xf32>
    %cst_24 = arith.constant dense<0.000000e+00> : vector<4x8xf32>
    %28 = vector.multi_reduction <add>, %25, %cst_24 [2] : vector<4x8x8xf32> to vector<4x8xf32>
    %29 = vector.shape_cast %28 : vector<4x8xf32> to vector<4x8x1xf32>
    %30 = arith.addf %27, %29 : vector<4x8x1xf32>
    %c0_25 = arith.constant 0 : index
    %c0_26 = arith.constant 0 : index
    %c0_27 = arith.constant 0 : index
    %31 = vector.load %arg11[%c0_25, %c0_26, %c0_27] : memref<4x8x1xf32, #tpu.memory_space<vmem>>, vector<4x8x1xf32>
    tpu.vector_store %arg11[%c0_25, %c0_26, %c0_27], %30 {strides = array<i32>} : memref<4x8x1xf32, #tpu.memory_space<vmem>>, vector<4x8x1xf32>,
    %32 = arith.truncf %25 : vector<4x8x8xf32> to vector<4x8x8xbf16>
    "tpu.trace_start"() <{level = 10 : i32, message = "hqk,hkd->hqd"}> : () -> ()
    %cst_28 = arith.constant dense<0.000000e+00> : vector<4x8x8xf32>
    %33 = tpu.matmul %32, %8, %cst_28 {dimension_numbers = #tpu.dot_dimension_numbers<[2], [1], [1], [2], [0, 0, 0, 1, 1, 2], [0], [0]>} : vector<4x8x8xbf16>, vector<4x8x8xbf16>, vector<4x8x8xf32> -> vector<4x8x8xf32>
    "tpu.trace_stop"() : () -> ()
    %c0_29 = arith.constant 0 : index
    %c0_30 = arith.constant 0 : index
    %c0_31 = arith.constant 0 : index
    %34 = vector.load %arg12[%c0_29, %c0_30, %c0_31] : memref<4x8x8xf32, #tpu.memory_space<vmem>>, vector<4x8x8xf32>
    %35 = vector.broadcast %22 : vector<4x8x1xf32> to vector<4x8x8xf32>
    %36 = arith.mulf %35, %34 : vector<4x8x8xf32>
    %37 = arith.addf %36, %33 : vector<4x8x8xf32>
    %c0_32 = arith.constant 0 : index
    %c0_33 = arith.constant 0 : index
    %c0_34 = arith.constant 0 : index
    %38 = vector.load %arg12[%c0_32, %c0_33, %c0_34] : memref<4x8x8xf32, #tpu.memory_space<vmem>>, vector<4x8x8xf32>
    tpu.vector_store %arg12[%c0_32, %c0_33, %c0_34], %37 {strides = array<i32>} : memref<4x8x8xf32, #tpu.memory_space<vmem>>, vector<4x8x8xf32>,
    %c0_35 = arith.constant 0 : index
    %c0_36 = arith.constant 0 : index
    %c0_37 = arith.constant 0 : index
    %39 = vector.load %arg10[%c0_35, %c0_36, %c0_37] : memref<4x8x1xf32, #tpu.memory_space<vmem>>, vector<4x8x1xf32>
    tpu.vector_store %arg10[%c0_35, %c0_36, %c0_37], %20 {strides = array<i32>} : memref<4x8x1xf32, #tpu.memory_space<vmem>>, vector<4x8x1xf32>,
    %c0_i32_38 = arith.constant 0 : i32
    %40 = arith.cmpi eq, %arg2, %c0_i32_38 : i32
    %41 = arith.extui %40 : i1 to i32
    %c0_i32_39 = arith.constant 0 : i32
    %42 = arith.cmpi ne, %41, %c0_i32_39 : i32
    scf.if %42 {
      %c0_40 = arith.constant 0 : index
      %c0_41 = arith.constant 0 : index
      %c0_42 = arith.constant 0 : index
      %43 = vector.load %arg11[%c0_40, %c0_41, %c0_42] : memref<4x8x1xf32, #tpu.memory_space<vmem>>, vector<4x8x1xf32>
      %44 = tpu.reciprocal %43 {approx = true} : vector<4x8x1xf32> -> vector<4x8x1xf32>
      %c0_43 = arith.constant 0 : index
      %c0_44 = arith.constant 0 : index
      %c0_45 = arith.constant 0 : index
      %45 = vector.load %arg12[%c0_43, %c0_44, %c0_45] : memref<4x8x8xf32, #tpu.memory_space<vmem>>, vector<4x8x8xf32>
      %46 = vector.broadcast %44 : vector<4x8x1xf32> to vector<4x8x8xf32>
      %47 = arith.mulf %45, %46 : vector<4x8x8xf32>
      %48 = vector.extract_strided_slice %47 {offsets = [0, 0, 0], sizes = [1, 8, 8], strides = [1, 1, 1]} : vector<4x8x8xf32> to vector<1x8x8xf32>
      %49 = vector.shape_cast %48 : vector<1x8x8xf32> to vector<8x8xf32>
      %c0_46 = arith.constant 0 : index
      %c0_47 = arith.constant 0 : index
      %50 = vector.load %arg13[%c0_46, %c0_47] : memref<8x32xf32, #tpu.memory_space<vmem>>, vector<8x8xf32>
      tpu.vector_store %arg13[%c0_46, %c0_47], %49 {strides = array<i32>} : memref<8x32xf32, #tpu.memory_space<vmem>>, vector<8x8xf32>,
      %51 = vector.extract_strided_slice %47 {offsets = [1, 0, 0], sizes = [1, 8, 8], strides = [1, 1, 1]} : vector<4x8x8xf32> to vector<1x8x8xf32>
      %52 = vector.shape_cast %51 : vector<1x8x8xf32> to vector<8x8xf32>
      %c0_48 = arith.constant 0 : index
      %c8 = arith.constant 8 : index
      %53 = vector.load %arg13[%c0_48, %c8] : memref<8x32xf32, #tpu.memory_space<vmem>>, vector<8x8xf32>
      tpu.vector_store %arg13[%c0_48, %c8], %52 {strides = array<i32>} : memref<8x32xf32, #tpu.memory_space<vmem>>, vector<8x8xf32>,
      %54 = vector.extract_strided_slice %47 {offsets = [2, 0, 0], sizes = [1, 8, 8], strides = [1, 1, 1]} : vector<4x8x8xf32> to vector<1x8x8xf32>
      %55 = vector.shape_cast %54 : vector<1x8x8xf32> to vector<8x8xf32>
      %c0_49 = arith.constant 0 : index
      %c16 = arith.constant 16 : index
      %56 = vector.load %arg13[%c0_49, %c16] : memref<8x32xf32, #tpu.memory_space<vmem>>, vector<8x8xf32>
      tpu.vector_store %arg13[%c0_49, %c16], %55 {strides = array<i32>} : memref<8x32xf32, #tpu.memory_space<vmem>>, vector<8x8xf32>,
      %57 = vector.extract_strided_slice %47 {offsets = [3, 0, 0], sizes = [1, 8, 8], strides = [1, 1, 1]} : vector<4x8x8xf32> to vector<1x8x8xf32>
      %58 = vector.shape_cast %57 : vector<1x8x8xf32> to vector<8x8xf32>
      %c0_50 = arith.constant 0 : index
      %c24 = arith.constant 24 : index
      %59 = vector.load %arg13[%c0_50, %c24] : memref<8x32xf32, #tpu.memory_space<vmem>>, vector<8x8xf32>
      tpu.vector_store %arg13[%c0_50, %c24], %58 {strides = array<i32>} : memref<8x32xf32, #tpu.memory_space<vmem>>, vector<8x8xf32>,
      %c0_51 = arith.constant 0 : index
      %c0_52 = arith.constant 0 : index
      %60 = vector.load %arg13[%c0_51, %c0_52] : memref<8x32xf32, #tpu.memory_space<vmem>>, vector<8x32xf32>
      %61 = arith.truncf %60 : vector<8x32xf32> to vector<8x32xbf16>
      %c0_53 = arith.constant 0 : index
      %c0_54 = arith.constant 0 : index
      %62 = vector.load %arg7[%c0_53, %c0_54] : memref<32x128xbf16, #tpu.memory_space<vmem>>, vector<32x128xbf16>
      %cst_55 = arith.constant dense<0.000000e+00> : vector<8x128xf32>
      %63 = tpu.matmul %61, %62, %cst_55 {dimension_numbers = #tpu.dot_dimension_numbers<[1], [0], [0], [1], [0, 0, 1, 1], [], []>} : vector<8x32xbf16>, vector<32x128xbf16>, vector<8x128xf32> -> vector<8x128xf32>
      %c0_56 = arith.constant 0 : index
      %c0_57 = arith.constant 0 : index
      %64 = vector.load %arg8[%c0_56, %c0_57] : memref<1x128xf32, #tpu.memory_space<vmem>>, vector<1x128xf32>
      %65 = vector.broadcast %64 : vector<1x128xf32> to vector<8x128xf32>
      %66 = arith.addf %63, %65 : vector<8x128xf32>
      %c0_58 = arith.constant 0 : index
      %c0_59 = arith.constant 0 : index
      %c0_60 = arith.constant 0 : index
      %67 = vector.load %arg9[%c0_58, %c0_59, %c0_60] : memref<1x8x128xf32, #tpu.memory_space<vmem>>, vector<1x8x128xf32>
      %68 = vector.shape_cast %67 : vector<1x8x128xf32> to vector<8x128xf32>
      %69 = vector.shape_cast %66 : vector<8x128xf32> to vector<1x8x128xf32>
      tpu.vector_store %arg9[%c0_58, %c0_59, %c0_60], %69 {strides = array<i32>} : memref<1x8x128xf32, #tpu.memory_space<vmem>>, vector<1x8x128xf32>,
    } else {
    }
    return
  }
  func.func @transform_0(%arg0: i32, %arg1: i32, %arg2: i32) -> (i32, i32, i32, i32) {
    %c0_i32 = arith.constant 0 : i32
    %c0_i32_0 = arith.constant 0 : i32
    return %arg0, %c0_i32, %arg1, %arg2 : i32, i32, i32, i32
  }
  func.func @transform_1(%arg0: i32, %arg1: i32, %arg2: i32) -> (i32, i32, i32, i32) {
    %c0_i32 = arith.constant 0 : i32
    %c0_i32_0 = arith.constant 0 : i32
    %c0_i32_1 = arith.constant 0 : i32
    return %arg0, %c0_i32, %arg1, %c0_i32_0 : i32, i32, i32, i32
  }
  func.func @transform_2(%arg0: i32, %arg1: i32, %arg2: i32) -> (i32, i32, i32, i32) {
    %c0_i32 = arith.constant 0 : i32
    %c0_i32_0 = arith.constant 0 : i32
    %c0_i32_1 = arith.constant 0 : i32
    return %arg0, %c0_i32, %arg2, %c0_i32_0 : i32, i32, i32, i32
  }
  func.func @transform_3(%arg0: i32, %arg1: i32, %arg2: i32) -> (i32, i32, i32, i32) {
    %c0_i32 = arith.constant 0 : i32
    %c0_i32_0 = arith.constant 0 : i32
    %c0_i32_1 = arith.constant 0 : i32
    return %arg0, %c0_i32, %arg2, %c0_i32_0 : i32, i32, i32, i32
  }
  func.func @transform_4(%arg0: i32, %arg1: i32, %arg2: i32) -> (i32, i32) {
    %c0_i32 = arith.constant 0 : i32
    %c0_i32_0 = arith.constant 0 : i32
    %c0_i32_1 = arith.constant 0 : i32
    return %c0_i32, %c0_i32_0 : i32, i32
  }
  func.func @transform_5(%arg0: i32, %arg1: i32, %arg2: i32) -> (i32, i32) {
    %c0_i32 = arith.constant 0 : i32
    %c0_i32_0 = arith.constant 0 : i32
    %c0_i32_1 = arith.constant 0 : i32
    return %c0_i32, %c0_i32_0 : i32, i32
  }
  func.func @transform_6(%arg0: i32, %arg1: i32, %arg2: i32) -> (i32, i32, i32) {
    %c0_i32 = arith.constant 0 : i32
    %c0_i32_0 = arith.constant 0 : i32
    return %arg0, %arg1, %c0_i32 : i32, i32, i32
  }
}

</mosaic_0001>

<llo_original>
// kernel: tpu_custom_call.1
$region0: #{tpu_custom_call.1}
  #allocation0 [shape = 'u32[]', space=smem, size = 0x4, offset = 0x4, fixed_abs, tag = 'smem constant byte address 0x4 - core index']
  #allocation1 [shape = 'u32[72,128]{1,0:T(1,128)}', space=vmem, size = 0x9000, scoped, tag = 'internal scratch']
  #allocation2 [shape = 'f32[4,8,1]{2,1,0:T(8,128)}', space=vmem, size = 0x4000, scoped, tag = 'scratch operand']
  #allocation3 [shape = 'f32[4,8,1]{2,1,0:T(8,128)}', space=vmem, size = 0x4000, scoped, tag = 'scratch operand']
  #allocation4 [shape = 'f32[4,8,8]{2,1,0:T(8,128)}', space=vmem, size = 0x4000, scoped, tag = 'scratch operand']
  #allocation5 [shape = 'f32[8,32]{1,0:T(8,128)}', space=vmem, size = 0x1000, scoped, tag = 'scratch operand']
  %s0 = inlined_call_operand.hbm [shape: f32[2,1,8,8], index: 0, kind: input, shape index: {}]
  %s1 = inlined_call_operand.hbm [shape: bf16[2,4,8,8], index: 1, kind: input, shape index: {}]
  %s2 = inlined_call_operand.hbm [shape: bf16[2,4,8,8], index: 2, kind: input, shape index: {}]
  %s3 = inlined_call_operand.hbm [shape: bf16[2,4,8,8], index: 3, kind: input, shape index: {}]
  %s4 = inlined_call_operand.hbm [shape: bf16[32,128], index: 4, kind: input, shape index: {}]
  %s5 = inlined_call_operand.vmem [shape: f32[1,128], index: 5, kind: input, shape index: {}]
  %s6 = inlined_call_operand.hbm [shape: f32[2,8,128], index: 6, kind: output, shape index: {}]
  %s7 = sld [smem:[#allocation0]]
  $region85: #{tpu_custom_call.1} parent=0
    _
  %s9 = ssub.s32 1, %s7
  %s10 = scalar_select 0, %s9, %s7
  $region1: #{tpu_custom_call.1} parent=0
    #allocation6 [shape = 'u8[8192]{0}', space=vmem, size = 0x2000, scoped, tag = 'input window, operand 0']
    #allocation7 [shape = 's32[2]{0}', space=sflag, size = 0x8, scoped, tag = 'scoped memory for tpu_custom_call.1']
    #allocation8 [shape = 's32[2]{0}', space=sflag, size = 0x8, scoped, tag = 'scoped memory for tpu_custom_call.1']
    #allocation9 [shape = 'u8[16384]{0}', space=vmem, size = 0x4000, scoped, tag = 'input window, operand 1']
    #allocation10 [shape = 's32[2]{0}', space=sflag, size = 0x8, scoped, tag = 'scoped memory for tpu_custom_call.1']
    #allocation11 [shape = 'u8[16384]{0}', space=vmem, size = 0x4000, scoped, tag = 'input window, operand 2']
    #allocation12 [shape = 'u8[16384]{0}', space=vmem, size = 0x4000, scoped, tag = 'input window, operand 3']
    #allocation13 [shape = 's32[2]{0}', space=sflag, size = 0x8, scoped, tag = 'scoped memory for tpu_custom_call.1']
    #allocation14 [shape = 'u8[8192]{0}', space=vmem, size = 0x2000, scoped, tag = 'input window, operand 4, single buffered']
    #allocation15 [shape = 'u8[8192]{0}', space=vmem, size = 0x2000, scoped, tag = 'output window, operand 0']
    %11 = vsyncpa [#allocation7], 0
    %s12 = scalar_lea.sflag [#allocation7], 1
    %13 = vsyncpa %s12, 0
    %14 = vsyncpa [#allocation10], 0
    %s15 = scalar_lea.sflag [#allocation10], 1
    %16 = vsyncpa %s15, 0
    %17 = vsyncpa [#allocation13], 0
    %s18 = scalar_lea.sflag [#allocation13], 1
    %19 = vsyncpa %s18, 0
    %20 = vsyncpa [#allocation8], 0
    %s21 = scalar_lea.sflag [#allocation8], 1
    %22 = vsyncpa %s21, 0
    loop: start=0, step=1, limit=4
    $region2: #{tpu_custom_call.1} parent=1 // loop_pre_header
      _
    $region3: #{tpu_custom_call.1} parent=1 // loop_header
      %s24 = sphi 0, %s28
      %p25 = scmp.ge.s32.totalorder %s24, 4
      %s31 = sphi 0, %s50
      %s32 = sphi 0, %s46
      %s33 = sphi 0, %s42
      %s34 = sphi 0, %s31
      %s35 = sphi 0, %s32
      %s36 = sphi 0, %s33
      %s37 = sphi 0, %s34
      %s38 = sphi 0, %s35
      %s39 = sphi 0, %s36
      %s57 = sphi 0, %s59
      %s60 = sphi 0, %s57
      %s61 = sphi 0, %s60
      %s77 = sphi 0, %s61
      %s85 = sphi 0, %s87
      %s88 = sphi 0, %s85
      %s89 = sphi 0, %s88
      %s105 = sphi 0, %s89
      %s113 = sphi 0, %s115
      %s116 = sphi 0, %s113
      %s117 = sphi 0, %s116
      %s133 = sphi 0, %s117
      %s141 = sphi 0, %s143
      %s144 = sphi 0, %s141
      %s145 = sphi 0, %s144
      %s161 = sphi 0, %s145
      %s165 = sphi 0, %s165
      %s167 = sphi 0, %s165
      %s168 = sphi 0, %s167
      %s182 = sphi 0, %s168
      %s186 = sphi 0, %s186
      %s188 = sphi 0, %s186
      %s189 = sphi 0, %s188
      %s203 = sphi 0, %s189
      %s211 = sphi 0, %s213
      %s214 = sphi 0, %s211
      %s215 = sphi 0, %s214
      %s231 = sphi 0, %s215
    $region4: #{tpu_custom_call.1} parent=1 // loop_header_branch
      %27 = sbr.rel (%p25) target = $region8
    $region5: #{tpu_custom_call.1} parent=1 // loop_body
      %s29 = ssub.s32 %s24, 1
      %s30 = ssub.s32 %s24, 2
      %s40 = sadd.s32 1, %s33
      %p41 = scmp.ge.s32.totalorder %s40, 1
      %s42 = scalar_select %p41, 0, %s40
      %s43 = sadd.s32 1, %s32
      %s44 = scalar_select %p41, %s43, %s32
      %p45 = scmp.ge.s32.totalorder %s44, 1
      %s46 = scalar_select %p45, 0, %s44
      %s47 = sadd.s32 1, %s31
      %s48 = scalar_select %p45, %s47, %s31
      %p49 = scmp.ge.s32.totalorder %s48, 2
      %s50 = scalar_select %p49, 0, %s48
      %s51 = ssub.s32 %s31, %s50
      %s52 = ssub.s32 %s32, %s46
      %s53 = sor.u32 %s51, %s52
      %s54 = ssub.s32 %s33, %s42
      %s55 = sor.u32 %s53, %s54
      %p56 = scmp.eq.s32.totalorder %s55, 0
      %s58 = sadd.s32 %s57, 1
      %s59 = scalar_select %p56, %s57, %s58
      %p62 = pneg %p56
      %p63 = scmp.eq.s32.totalorder %s24, 1
      %p64 = por %p62, %p63
      %p65 = scmp.ne.s32.totalorder %s57, %s60
      %p66 = scmp.eq.s32.totalorder %s24, 0
      %p67 = por %p65, %p66
      %p68 = scmp.ne.s32.totalorder %s57, %s60
      %p69 = scmp.eq.s32.totalorder %s29, 1
      %p70 = por %p68, %p69
      %p71 = scmp.ne.s32.totalorder %s60, %s61
      %p72 = scmp.eq.s32.totalorder %s29, 0
      %p73 = por %p71, %p72
      %p74 = scmp.ne.s32.totalorder %s60, %s61
      %p75 = scmp.eq.s32.totalorder %s30, 1
      %p76 = por %p74, %p75
      %p78 = scmp.ne.s32.totalorder %s61, %s77
      %p79 = scmp.eq.s32.totalorder %s30, 0
      %p80 = por %p78, %p79
      %s81 = ssub.s32 %s31, %s50
      %s82 = ssub.s32 %s32, %s46
      %s83 = sor.u32 %s81, %s82
      %p84 = scmp.eq.s32.totalorder %s83, 0
      %s86 = sadd.s32 %s85, 1
      %s87 = scalar_select %p84, %s85, %s86
      %p90 = pneg %p84
      %p91 = scmp.eq.s32.totalorder %s24, 1
      %p92 = por %p90, %p91
      %p93 = scmp.ne.s32.totalorder %s85, %s88
      %p94 = scmp.eq.s32.totalorder %s24, 0
      %p95 = por %p93, %p94
      %p96 = scmp.ne.s32.totalorder %s85, %s88
      %p97 = scmp.eq.s32.totalorder %s29, 1
      %p98 = por %p96, %p97
      %p99 = scmp.ne.s32.totalorder %s88, %s89
      %p100 = scmp.eq.s32.totalorder %s29, 0
      %p101 = por %p99, %p100
      %p102 = scmp.ne.s32.totalorder %s88, %s89
      %p103 = scmp.eq.s32.totalorder %s30, 1
      %p104 = por %p102, %p103
      %p106 = scmp.ne.s32.totalorder %s89, %s105
      %p107 = scmp.eq.s32.totalorder %s30, 0
      %p108 = por %p106, %p107
      %s109 = ssub.s32 %s31, %s50
      %s110 = ssub.s32 %s33, %s42
      %s111 = sor.u32 %s109, %s110
      %p112 = scmp.eq.s32.totalorder %s111, 0
      %s114 = sadd.s32 %s113, 1
      %s115 = scalar_select %p112, %s113, %s114
      %p118 = pneg %p112
      %p119 = scmp.eq.s32.totalorder %s24, 1
      %p120 = por %p118, %p119
      %p121 = scmp.ne.s32.totalorder %s113, %s116
      %p122 = scmp.eq.s32.totalorder %s24, 0
      %p123 = por %p121, %p122
      %p124 = scmp.ne.s32.totalorder %s113, %s116
      %p125 = scmp.eq.s32.totalorder %s29, 1
      %p126 = por %p124, %p125
      %p127 = scmp.ne.s32.totalorder %s116, %s117
      %p128 = scmp.eq.s32.totalorder %s29, 0
      %p129 = por %p127, %p128
      %p130 = scmp.ne.s32.totalorder %s116, %s117
      %p131 = scmp.eq.s32.totalorder %s30, 1
      %p132 = por %p130, %p131
      %p134 = scmp.ne.s32.totalorder %s117, %s133
      %p135 = scmp.eq.s32.totalorder %s30, 0
      %p136 = por %p134, %p135
      %s137 = ssub.s32 %s31, %s50
      %s138 = ssub.s32 %s33, %s42
      %s139 = sor.u32 %s137, %s138
      %p140 = scmp.eq.s32.totalorder %s139, 0
      %s142 = sadd.s32 %s141, 1
      %s143 = scalar_select %p140, %s141, %s142
      %p146 = pneg %p140
      %p147 = scmp.eq.s32.totalorder %s24, 1
      %p148 = por %p146, %p147
      %p149 = scmp.ne.s32.totalorder %s141, %s144
      %p150 = scmp.eq.s32.totalorder %s24, 0
      %p151 = por %p149, %p150
      %p152 = scmp.ne.s32.totalorder %s141, %s144
      %p153 = scmp.eq.s32.totalorder %s29, 1
      %p154 = por %p152, %p153
      %p155 = scmp.ne.s32.totalorder %s144, %s145
      %p156 = scmp.eq.s32.totalorder %s29, 0
      %p157 = por %p155, %p156
      %p158 = scmp.ne.s32.totalorder %s144, %s145
      %p159 = scmp.eq.s32.totalorder %s30, 1
      %p160 = por %p158, %p159
      %p162 = scmp.ne.s32.totalorder %s145, %s161
      %p163 = scmp.eq.s32.totalorder %s30, 0
      %p164 = por %p162, %p163
      %s166 = sadd.s32 %s165, 1
      %p169 = scmp.eq.s32.totalorder %s24, 1
      %p170 = scmp.ne.s32.totalorder %s165, %s167
      %p171 = scmp.eq.s32.totalorder %s24, 0
      %p172 = por %p170, %p171
      %p173 = scmp.ne.s32.totalorder %s165, %s167
      %p174 = scmp.eq.s32.totalorder %s29, 1
      %p175 = por %p173, %p174
      %p176 = scmp.ne.s32.totalorder %s167, %s168
      %p177 = scmp.eq.s32.totalorder %s29, 0
      %p178 = por %p176, %p177
      %p179 = scmp.ne.s32.totalorder %s167, %s168
      %p180 = scmp.eq.s32.totalorder %s30, 1
      %p181 = por %p179, %p180
      %p183 = scmp.ne.s32.totalorder %s168, %s182
      %p184 = scmp.eq.s32.totalorder %s30, 0
      %p185 = por %p183, %p184
      %s187 = sadd.s32 %s186, 1
      %p190 = scmp.eq.s32.totalorder %s24, 1
      %p191 = scmp.ne.s32.totalorder %s186, %s188
      %p192 = scmp.eq.s32.totalorder %s24, 0
      %p193 = por %p191, %p192
      %p194 = scmp.ne.s32.totalorder %s186, %s188
      %p195 = scmp.eq.s32.totalorder %s29, 1
      %p196 = por %p194, %p195
      %p197 = scmp.ne.s32.totalorder %s188, %s189
      %p198 = scmp.eq.s32.totalorder %s29, 0
      %p199 = por %p197, %p198
      %p200 = scmp.ne.s32.totalorder %s188, %s189
      %p201 = scmp.eq.s32.totalorder %s30, 1
      %p202 = por %p200, %p201
      %p204 = scmp.ne.s32.totalorder %s189, %s203
      %p205 = scmp.eq.s32.totalorder %s30, 0
      %p206 = por %p204, %p205
      %s207 = ssub.s32 %s31, %s50
      %s208 = ssub.s32 %s32, %s46
      %s209 = sor.u32 %s207, %s208
      %p210 = scmp.eq.s32.totalorder %s209, 0
      %s212 = sadd.s32 %s211, 1
      %s213 = scalar_select %p210, %s211, %s212
      %p216 = pneg %p210
      %p217 = scmp.eq.s32.totalorder %s24, 1
      %p218 = por %p216, %p217
      %p219 = scmp.ne.s32.totalorder %s211, %s214
      %p220 = scmp.eq.s32.totalorder %s24, 0
      %p221 = por %p219, %p220
      %p222 = scmp.ne.s32.totalorder %s211, %s214
      %p223 = scmp.eq.s32.totalorder %s29, 1
      %p224 = por %p222, %p223
      %p225 = scmp.ne.s32.totalorder %s214, %s215
      %p226 = scmp.eq.s32.totalorder %s29, 0
      %p227 = por %p225, %p226
      %p228 = scmp.ne.s32.totalorder %s214, %s215
      %p229 = scmp.eq.s32.totalorder %s30, 1
      %p230 = por %p228, %p229
      %p232 = scmp.ne.s32.totalorder %s215, %s231
      %p233 = scmp.eq.s32.totalorder %s30, 0
      %p234 = por %p232, %p233
      %p235 = scmp.le.s32.totalorder 1, %s24
      %p236 = scmp.lt.s32.totalorder %s24, 3
      %p237 = pnand %p235, %p236
      %p238 = pneg %p237
      // Predicated region
      $region9: #{tpu_custom_call.1} parent=5 // pred_check
        _
      $region10: #{tpu_custom_call.1} parent=5 // pred_check_branch
        %240 = sbr.rel (%p237) target = $region12
      $region11: #{tpu_custom_call.1} parent=5 // pred_region
        %s241 = ssub.s32 %s24, 1
        // Predicated region
        $region13: #{tpu_custom_call.1} parent=11 // pred_check
          %p242 = pneg %p178
        $region14: #{tpu_custom_call.1} parent=11 // pred_check_branch
          %244 = sbr.rel (%p242) target = $region16
        $region15: #{tpu_custom_call.1} parent=11 // pred_region
          %246 = vsyncadd [#allocation13], 0
          %s247 = sshll.u32 %s4, 4
          %s248 = int_to_ptr.hbm [resolvable:$true] %s247
          %s249 = sshll.u32 [#allocation14], 4
          %s250 = int_to_ptr.vmem [resolvable:$true] %s249
          %255 = dma.hbm_to_vmem [thread:$0]  %s248, 256, %s250, [#allocation13], 64, 64, 4
        $region16: #{tpu_custom_call.1} parent=11 // pred_fallthru
          _
        // Predicated region
        $region17: #{tpu_custom_call.1} parent=11 // pred_check
          %p256 = pneg %p199
        $region18: #{tpu_custom_call.1} parent=11 // pred_check_branch
          %258 = sbr.rel (%p256) target = $region20
        $region19: #{tpu_custom_call.1} parent=11 // pred_region
          _
        $region20: #{tpu_custom_call.1} parent=11 // pred_fallthru
          _
      $region12: #{tpu_custom_call.1} parent=5 // pred_fallthru
        _
      %p259 = scmp.lt.s32.totalorder %s24, 2
      // Predicated region
      $region21: #{tpu_custom_call.1} parent=5 // pred_check
        %p260 = pneg %p259
      $region22: #{tpu_custom_call.1} parent=5 // pred_check_branch
        %262 = sbr.rel (%p260) target = $region24
      $region23: #{tpu_custom_call.1} parent=5 // pred_region
        // Predicated region
        $region25: #{tpu_custom_call.1} parent=23 // pred_check
          %p263 = pneg %p67
        $region26: #{tpu_custom_call.1} parent=23 // pred_check_branch
          %265 = sbr.rel (%p263) target = $region28
        $region27: #{tpu_custom_call.1} parent=23 // pred_region
          %s266 = sand.u32 %s57, 1
          %s267 = scalar_lea.sflag [#allocation7], %s266
          %s268 = sand.u32 %s57, 1
          %s269 = smul.addr %s268, 8
          %s270 = scalar_lea.vmem [#allocation6], %s269
          %272 = vsyncadd %s267, 0
          %s273 = sadd.s32 %s33, %s32
          %s274 = sadd.s32 %s273, %s31
          %s275 = smul.addr %s274, 8
          %s276 = scalar_lea.hbm %s0, %s275
          %s278 = sshll.u32 %s276, 4
          %s279 = int_to_ptr.hbm [resolvable:$true] %s278
          %s280 = sshll.u32 %s270, 4
          %s281 = int_to_ptr.vmem [resolvable:$true] %s280
          %283 = dma.hbm_to_vmem [thread:$0]  %s279, 128, %s281, %s267
        $region28: #{tpu_custom_call.1} parent=23 // pred_fallthru
          _
        // Predicated region
        $region29: #{tpu_custom_call.1} parent=23 // pred_check
          %p284 = pneg %p95
        $region30: #{tpu_custom_call.1} parent=23 // pred_check_branch
          %286 = sbr.rel (%p284) target = $region32
        $region31: #{tpu_custom_call.1} parent=23 // pred_region
          %s287 = sand.u32 %s24, 1
          %s288 = scalar_lea.sflag [#allocation10], %s287
          %s289 = sand.u32 %s85, 1
          %s290 = smul.addr %s289, 16
          %s291 = scalar_lea.vmem [#allocation9], %s290
          %293 = vsyncadd %s288, 0
          %s294 = smul.addr %s31, 4
          %s295 = sadd.s32 %s32, %s294
          %s296 = smul.addr %s295, 4
          %s297 = scalar_lea.hbm %s1, %s296
          %s298 = sshll.u32 %s297, 4
          %s299 = int_to_ptr.hbm [resolvable:$true] %s298
          %s300 = sshll.u32 %s291, 4
          %s301 = int_to_ptr.vmem [resolvable:$true] %s300
          %306 = dma.hbm_to_vmem [thread:$0]  %s299, 256, %s301, %s288, 64, 64, 4
        $region32: #{tpu_custom_call.1} parent=23 // pred_fallthru
          _
        // Predicated region
        $region33: #{tpu_custom_call.1} parent=23 // pred_check
          %p307 = pneg %p123
        $region34: #{tpu_custom_call.1} parent=23 // pred_check_branch
          %309 = sbr.rel (%p307) target = $region36
        $region35: #{tpu_custom_call.1} parent=23 // pred_region
          %s310 = sand.u32 %s24, 1
          %s311 = scalar_lea.sflag [#allocation10], %s310
          %s312 = sand.u32 %s113, 1
          %s313 = smul.addr %s312, 16
          %s314 = scalar_lea.vmem [#allocation11], %s313
          %316 = vsyncadd %s311, 0
          %s317 = smul.addr %s31, 4
          %s318 = sadd.s32 %s33, %s317
          %s319 = smul.addr %s318, 4
          %s320 = scalar_lea.hbm %s2, %s319
          %s321 = sshll.u32 %s320, 4
          %s322 = int_to_ptr.hbm [resolvable:$true] %s321
          %s323 = sshll.u32 %s314, 4
          %s324 = int_to_ptr.vmem [resolvable:$true] %s323
          %329 = dma.hbm_to_vmem [thread:$0]  %s322, 256, %s324, %s311, 64, 64, 4
        $region36: #{tpu_custom_call.1} parent=23 // pred_fallthru
          _
        // Predicated region
        $region37: #{tpu_custom_call.1} parent=23 // pred_check
          %p330 = pneg %p151
        $region38: #{tpu_custom_call.1} parent=23 // pred_check_branch
          %332 = sbr.rel (%p330) target = $region40
        $region39: #{tpu_custom_call.1} parent=23 // pred_region
          %s333 = sand.u32 %s24, 1
          %s334 = scalar_lea.sflag [#allocation13], %s333
          %s335 = sand.u32 %s141, 1
          %s336 = smul.addr %s335, 16
          %s337 = scalar_lea.vmem [#allocation12], %s336
          %339 = vsyncadd %s334, 0
          %s340 = smul.addr %s31, 4
          %s341 = sadd.s32 %s33, %s340
          %s342 = smul.addr %s341, 4
          %s343 = scalar_lea.hbm %s3, %s342
          %s344 = sshll.u32 %s343, 4
          %s345 = int_to_ptr.hbm [resolvable:$true] %s344
          %s346 = sshll.u32 %s337, 4
          %s347 = int_to_ptr.vmem [resolvable:$true] %s346
          %352 = dma.hbm_to_vmem [thread:$0]  %s345, 256, %s347, %s334, 64, 64, 4
        $region40: #{tpu_custom_call.1} parent=23 // pred_fallthru
          _
      $region24: #{tpu_custom_call.1} parent=5 // pred_fallthru
        _
      %p353 = scmp.le.s32.totalorder 1, %s24
      %p354 = scmp.lt.s32.totalorder %s24, 3
      %p355 = pnand %p353, %p354
      %p356 = pneg %p355
      // Predicated region
      $region41: #{tpu_custom_call.1} parent=5 // pred_check
        _
      $region42: #{tpu_custom_call.1} parent=5 // pred_check_branch
        %358 = sbr.rel (%p355) target = $region44
      $region43: #{tpu_custom_call.1} parent=5 // pred_region
        %s359 = ssub.s32 %s24, 1
        %s360 = sand.u32 %s60, 1
        %s361 = scalar_lea.sflag [#allocation7], %s360
        %s362 = sand.u32 %s60, 1
        %s363 = smul.addr %s362, 8
        %s364 = scalar_lea.vmem [#allocation6], %s363
        // Predicated region
        $region45: #{tpu_custom_call.1} parent=43 // pred_check
          %p365 = pneg %p73
        $region46: #{tpu_custom_call.1} parent=43 // pred_check_branch
          %367 = sbr.rel (%p365) target = $region48
        $region47: #{tpu_custom_call.1} parent=43 // pred_region
          %369 = dma.done %s361, 128
        $region48: #{tpu_custom_call.1} parent=43 // pred_fallthru
          _
        %s370 = sand.u32 %s29, 1
        %s371 = scalar_lea.sflag [#allocation10], %s370
        %s372 = sand.u32 %s88, 1
        %s373 = smul.addr %s372, 16
        %s374 = scalar_lea.vmem [#allocation9], %s373
        // Predicated region
        $region49: #{tpu_custom_call.1} parent=43 // pred_check
          %p375 = pneg %p101
        $region50: #{tpu_custom_call.1} parent=43 // pred_check_branch
          %377 = sbr.rel (%p375) target = $region52
        $region51: #{tpu_custom_call.1} parent=43 // pred_region
          %379 = dma.done %s371, 256
        $region52: #{tpu_custom_call.1} parent=43 // pred_fallthru
          _
        %s380 = sand.u32 %s29, 1
        %s381 = scalar_lea.sflag [#allocation10], %s380
        %s382 = sand.u32 %s116, 1
        %s383 = smul.addr %s382, 16
        %s384 = scalar_lea.vmem [#allocation11], %s383
        // Predicated region
        $region53: #{tpu_custom_call.1} parent=43 // pred_check
          %p385 = pneg %p129
        $region54: #{tpu_custom_call.1} parent=43 // pred_check_branch
          %387 = sbr.rel (%p385) target = $region56
        $region55: #{tpu_custom_call.1} parent=43 // pred_region
          %389 = dma.done %s381, 256
        $region56: #{tpu_custom_call.1} parent=43 // pred_fallthru
          _
        %s390 = sand.u32 %s29, 1
        %s391 = scalar_lea.sflag [#allocation13], %s390
        %s392 = sand.u32 %s144, 1
        %s393 = smul.addr %s392, 16
        %s394 = scalar_lea.vmem [#allocation12], %s393
        // Predicated region
        $region57: #{tpu_custom_call.1} parent=43 // pred_check
          %p395 = pneg %p157
        $region58: #{tpu_custom_call.1} parent=43 // pred_check_branch
          %397 = sbr.rel (%p395) target = $region60
        $region59: #{tpu_custom_call.1} parent=43 // pred_region
          %399 = dma.done %s391, 256
        $region60: #{tpu_custom_call.1} parent=43 // pred_fallthru
          _
        // Predicated region
        $region61: #{tpu_custom_call.1} parent=43 // pred_check
          %p400 = pneg %p178
        $region62: #{tpu_custom_call.1} parent=43 // pred_check_branch
          %402 = sbr.rel (%p400) target = $region64
        $region63: #{tpu_custom_call.1} parent=43 // pred_region
          %404 = dma.done [#allocation13], 256
        $region64: #{tpu_custom_call.1} parent=43 // pred_fallthru
          _
        %s405 = sand.u32 %s60, 1
        %s406 = scalar_lea.sflag [#allocation7], %s405
        %s407 = sand.u32 %s60, 1
        %s408 = smul.addr %s407, 8
        %s409 = scalar_lea.vmem [#allocation6], %s408
        %p410 = pneg %p73
        %p411 = pneg %p70
        %s412 = sand.u32 %s29, 1
        %s413 = scalar_lea.sflag [#allocation10], %s412
        %s414 = sand.u32 %s88, 1
        %s415 = smul.addr %s414, 16
        %s416 = scalar_lea.vmem [#allocation9], %s415
        %p417 = pneg %p101
        %p418 = pneg %p98
        %s419 = sand.u32 %s29, 1
        %s420 = scalar_lea.sflag [#allocation10], %s419
        %s421 = sand.u32 %s116, 1
        %s422 = smul.addr %s421, 16
        %s423 = scalar_lea.vmem [#allocation11], %s422
        %p424 = pneg %p129
        %p425 = pneg %p126
        %s426 = sand.u32 %s29, 1
        %s427 = scalar_lea.sflag [#allocation13], %s426
        %s428 = sand.u32 %s144, 1
        %s429 = smul.addr %s428, 16
        %s430 = scalar_lea.vmem [#allocation12], %s429
        %p431 = pneg %p157
        %p432 = pneg %p154
        %p433 = pneg %p178
        %p434 = pneg %p175
        %p435 = pneg %p199
        %p436 = pneg %p196
        %p437 = pneg %p227
        %p438 = pneg %p224
        %s439 = sand.u32 %s214, 1
        %s440 = scalar_lea.sflag [#allocation8], %s439
        %s441 = sand.u32 %s214, 1
        %s442 = smul.addr %s441, 8
        %s443 = scalar_lea.vmem [#allocation15], %s442
        %p445 = scmp.eq.s32.totalorder %s36, 0
        // Predicated region
        $region65: #{tpu_custom_call.1} parent=43 // pred_check
          %p446 = pneg %p445
        $region66: #{tpu_custom_call.1} parent=43 // pred_check_branch
          %448 = sbr.rel (%p446) target = $region68
        $region67: #{tpu_custom_call.1} parent=43 // pred_region
          %vm449 = vcmask 7168
          %450 = vst.msk [vmem:[#allocation2] sm:$0xff] %vm449, -inf
          %451 = vst.msk [vmem:[#allocation2 + $0x8] sm:$0xff] %vm449, -inf
          %452 = vst.msk [vmem:[#allocation2 + $0x10] sm:$0xff] %vm449, -inf
          %453 = vst.msk [vmem:[#allocation2 + $0x18] sm:$0xff] %vm449, -inf
          %454 = vst.msk [vmem:[#allocation3] sm:$0xff] %vm449, 0.0
          %455 = vst.msk [vmem:[#allocation3 + $0x8] sm:$0xff] %vm449, 0.0
          %456 = vst.msk [vmem:[#allocation3 + $0x10] sm:$0xff] %vm449, 0.0
          %457 = vst.msk [vmem:[#allocation3 + $0x18] sm:$0xff] %vm449, 0.0
          %vm458 = vcmask 64512
          %459 = vst.msk [vmem:[#allocation4] sm:$0xff] %vm458, 0.0
          %460 = vst.msk [vmem:[#allocation4 + $0x8] sm:$0xff] %vm458, 0.0
          %461 = vst.msk [vmem:[#allocation4 + $0x10] sm:$0xff] %vm458, 0.0
          %462 = vst.msk [vmem:[#allocation4 + $0x18] sm:$0xff] %vm458, 0.0
        $region68: #{tpu_custom_call.1} parent=43 // pred_fallthru
          _
        %v463 = vld [vmem:[%s374] sm:$0xf]
        %v464 = vld [vmem:[%s374 + $0x4] sm:$0xf]
        %v465 = vld [vmem:[%s374 + $0x8] sm:$0xf]
        %v466 = vld [vmem:[%s374 + $0xc] sm:$0xf]
        %v467 = vld [vmem:[%s384] sm:$0xf]
        %v468 = vld [vmem:[%s384 + $0x4] sm:$0xf]
        %v469 = vld [vmem:[%s384 + $0x8] sm:$0xf]
        %v470 = vld [vmem:[%s384 + $0xc] sm:$0xf]
        %v471 = vld [vmem:[%s394] sm:$0xf]
        %v472 = vld [vmem:[%s394 + $0x4] sm:$0xf]
        %v473 = vld [vmem:[%s394 + $0x8] sm:$0xf]
        %v474 = vld [vmem:[%s394 + $0xc] sm:$0xf]
        %vm475 = vcmask 64512
        %v477 = vsel %vm475, %v463, 0
        %v480 = vsel %vm475, %v467, 0
        %482 = vmatpush.bf16.xpose.msra.mxu0 0
        %483 = vmatpush.bf16.xpose.msra.mxu0 0
        %484 = vmatpush.bf16.xpose.msra.mxu0 0
        %485 = vmatpush.bf16.xpose.msra.mxu0 0
        %486 = vmatpush.bf16.xpose.msra.mxu0 0
        %487 = vmatpush.bf16.xpose.msra.mxu0 0
        %488 = vmatpush.bf16.xpose.msra.mxu0 0
        %489 = vmatpush.bf16.xpose.msra.mxu0 %v480
        %490 = vmatmul.bf16.gmra.mxu0 %v477
        %v491 = vpop.f32.mrf.mxu0
        %v492 = vadd.f32 0.0, %v491
        %v493 = vpop.f32.mrf.mxu0
        %494 = vdwg.mxu0
        %v496 = vsel %vm475, %v464, 0
        %v499 = vsel %vm475, %v468, 0
        %501 = vmatpush.bf16.xpose.msra.mxu0 0
        %502 = vmatpush.bf16.xpose.msra.mxu0 0
        %503 = vmatpush.bf16.xpose.msra.mxu0 0
        %504 = vmatpush.bf16.xpose.msra.mxu0 0
        %505 = vmatpush.bf16.xpose.msra.mxu0 0
        %506 = vmatpush.bf16.xpose.msra.mxu0 0
        %507 = vmatpush.bf16.xpose.msra.mxu0 0
        %508 = vmatpush.bf16.xpose.msra.mxu0 %v499
        %509 = vmatmul.bf16.gmra.mxu0 %v496
        %v510 = vpop.f32.mrf.mxu0
        %v511 = vadd.f32 0.0, %v510
        %v512 = vpop.f32.mrf.mxu0
        %513 = vdwg.mxu0
        %v515 = vsel %vm475, %v465, 0
        %v518 = vsel %vm475, %v469, 0
        %520 = vmatpush.bf16.xpose.msra.mxu0 0
        %521 = vmatpush.bf16.xpose.msra.mxu0 0
        %522 = vmatpush.bf16.xpose.msra.mxu0 0
        %523 = vmatpush.bf16.xpose.msra.mxu0 0
        %524 = vmatpush.bf16.xpose.msra.mxu0 0
        %525 = vmatpush.bf16.xpose.msra.mxu0 0
        %526 = vmatpush.bf16.xpose.msra.mxu0 0
        %527 = vmatpush.bf16.xpose.msra.mxu0 %v518
        %528 = vmatmul.bf16.gmra.mxu0 %v515
        %v529 = vpop.f32.mrf.mxu0
        %v530 = vadd.f32 0.0, %v529
        %v531 = vpop.f32.mrf.mxu0
        %532 = vdwg.mxu0
        %v534 = vsel %vm475, %v466, 0
        %v537 = vsel %vm475, %v470, 0
        %539 = vmatpush.bf16.xpose.msra.mxu0 0
        %540 = vmatpush.bf16.xpose.msra.mxu0 0
        %541 = vmatpush.bf16.xpose.msra.mxu0 0
        %542 = vmatpush.bf16.xpose.msra.mxu0 0
        %543 = vmatpush.bf16.xpose.msra.mxu0 0
        %544 = vmatpush.bf16.xpose.msra.mxu0 0
        %545 = vmatpush.bf16.xpose.msra.mxu0 0
        %546 = vmatpush.bf16.xpose.msra.mxu0 %v537
        %547 = vmatmul.bf16.gmra.mxu0 %v534
        %v548 = vpop.f32.mrf.mxu0
        %v549 = vadd.f32 0.0, %v548
        %v550 = vpop.f32.mrf.mxu0
        %551 = vdwg.mxu0
        %v552 = vmul.f32 %v492, 0.17677669
        %v553 = vmul.f32 %v511, 0.17677669
        %v554 = vmul.f32 %v530, 0.17677669
        %v555 = vmul.f32 %v549, 0.17677669
        %v556 = vld [vmem:[%s364] sm:$0xff]
        %v557 = vadd.f32 %v552, %v556
        %v558 = vadd.f32 %v553, %v556
        %v559 = vadd.f32 %v554, %v556
        %v560 = vadd.f32 %v555, %v556
        %v561 = vld [vmem:[#allocation2] sm:$0xff]
        %v562 = vld [vmem:[#allocation2 + $0x8] sm:$0xff]
        %v563 = vld [vmem:[#allocation2 + $0x10] sm:$0xff]
        %v564 = vld [vmem:[#allocation2 + $0x18] sm:$0xff]
        %v565 = vsel %vm475, %v557, -inf
        %566 = vmax.xlane.f32.xlu0 %v565
        %v567 = vpop.xlane.xlu0 %566
        %v568 = vsel %vm475, %v558, -inf
        %569 = vmax.xlane.f32.xlu0 %v568
        %v570 = vpop.xlane.xlu0 %569
        %v571 = vsel %vm475, %v559, -inf
        %572 = vmax.xlane.f32.xlu0 %v571
        %v573 = vpop.xlane.xlu0 %572
        %v574 = vsel %vm475, %v560, -inf
        %575 = vmax.xlane.f32.xlu0 %v574
        %v576 = vpop.xlane.xlu0 %575
        %v577 = vmax.f32 %v561, %v567
        %v578 = vmax.f32 %v562, %v570
        %v579 = vmax.f32 %v563, %v573
        %v580 = vmax.f32 %v564, %v576
        %v581 = vsub.f32 %v561, %v577
        %v582 = vsub.f32 %v562, %v578
        %v583 = vsub.f32 %v563, %v579
        %v584 = vsub.f32 %v564, %v580
        %v585 = vmul.f32 %v581, 1.442695
        %v586 = vpow.pop %v585
        %v587 = vmul.f32 %v582, 1.442695
        %v588 = vpow.pop %v587
        %v589 = vmul.f32 %v583, 1.442695
        %v590 = vpow.pop %v589
        %v591 = vmul.f32 %v584, 1.442695
        %v592 = vpow.pop %v591
        %594 = vset.pattern.permute.xlu0 0
        %595 = vperm.xlu0 %594, %v577
        %v596 = vpop.permute.xlu0 %595
        %599 = vset.pattern.permute.xlu0 0
        %600 = vperm.xlu0 %599, %v578
        %v601 = vpop.permute.xlu0 %600
        %604 = vset.pattern.permute.xlu0 0
        %605 = vperm.xlu0 %604, %v579
        %v606 = vpop.permute.xlu0 %605
        %609 = vset.pattern.permute.xlu0 0
        %610 = vperm.xlu0 %609, %v580
        %v611 = vpop.permute.xlu0 %610
        %v613 = vsub.f32 %v557, %v596
        %v614 = vsub.f32 %v558, %v601
        %v615 = vsub.f32 %v559, %v606
        %v616 = vsub.f32 %v560, %v611
        %v617 = vmul.f32 %v613, 1.442695
        %v618 = vpow.pop %v617
        %v619 = vmul.f32 %v614, 1.442695
        %v620 = vpow.pop %v619
        %v621 = vmul.f32 %v615, 1.442695
        %v622 = vpow.pop %v621
        %v623 = vmul.f32 %v616, 1.442695
        %v624 = vpow.pop %v623
        %v625 = vld [vmem:[#allocation3] sm:$0xff]
        %v626 = vld [vmem:[#allocation3 + $0x8] sm:$0xff]
        %v627 = vld [vmem:[#allocation3 + $0x10] sm:$0xff]
        %v628 = vld [vmem:[#allocation3 + $0x18] sm:$0xff]
        %v629 = vmul.f32 %v586, %v625
        %v630 = vmul.f32 %v588, %v626
        %v631 = vmul.f32 %v590, %v627
        %v632 = vmul.f32 %v592, %v628
        %v633 = vsel %vm475, %v618, 0.0
        %634 = vadd.xlane.f32.xlu0 %v633
        %v635 = vpop.xlane.xlu0 %634
        %v636 = vsel %vm475, %v620, 0.0
        %637 = vadd.xlane.f32.xlu0 %v636
        %v638 = vpop.xlane.xlu0 %637
        %v639 = vsel %vm475, %v622, 0.0
        %640 = vadd.xlane.f32.xlu0 %v639
        %v641 = vpop.xlane.xlu0 %640
        %v642 = vsel %vm475, %v624, 0.0
        %643 = vadd.xlane.f32.xlu0 %v642
        %v644 = vpop.xlane.xlu0 %643
        %v645 = vadd.f32 %v629, %v635
        %v646 = vadd.f32 %v630, %v638
        %v647 = vadd.f32 %v631, %v641
        %v648 = vadd.f32 %v632, %v644
        %vm649 = vcmask 7168
        %650 = vst.msk [vmem:[#allocation3] sm:$0xff] %vm649, %v645
        %651 = vst.msk [vmem:[#allocation3 + $0x8] sm:$0xff] %vm649, %v646
        %652 = vst.msk [vmem:[#allocation3 + $0x10] sm:$0xff] %vm649, %v647
        %653 = vst.msk [vmem:[#allocation3 + $0x18] sm:$0xff] %vm649, %v648
        %v654 = vpack.c.bf16 %v618, %v618
        %v655 = vpack.c.bf16 %v620, %v620
        %v656 = vpack.c.bf16 %v622, %v622
        %v657 = vpack.c.bf16 %v624, %v624
        %v659 = vsel %vm475, %v654, 0
        %vm661 = vcmask 1043456
        %v663 = vsel %vm661, %v471, 0
        %665 = vmatpush.bf16.msra.mxu0 0
        %666 = vmatpush.bf16.msra.mxu0 0
        %667 = vmatpush.bf16.msra.mxu0 0
        %668 = vmatpush.bf16.msra.mxu0 0
        %669 = vmatpush.bf16.msra.mxu0 0
        %670 = vmatpush.bf16.msra.mxu0 0
        %671 = vmatpush.bf16.msra.mxu0 0
        %672 = vmatpush.bf16.msra.mxu0 %v663
        %673 = vmatmul.bf16.gmra.mxu0 %v659
        %v674 = vpop.f32.mrf.mxu0
        %v675 = vadd.f32 0.0, %v674
        %v676 = vpop.f32.mrf.mxu0
        %677 = vdwg.mxu0
        %v679 = vsel %vm475, %v655, 0
        %v682 = vsel %vm661, %v472, 0
        %684 = vmatpush.bf16.msra.mxu0 0
        %685 = vmatpush.bf16.msra.mxu0 0
        %686 = vmatpush.bf16.msra.mxu0 0
        %687 = vmatpush.bf16.msra.mxu0 0
        %688 = vmatpush.bf16.msra.mxu0 0
        %689 = vmatpush.bf16.msra.mxu0 0
        %690 = vmatpush.bf16.msra.mxu0 0
        %691 = vmatpush.bf16.msra.mxu0 %v682
        %692 = vmatmul.bf16.gmra.mxu0 %v679
        %v693 = vpop.f32.mrf.mxu0
        %v694 = vadd.f32 0.0, %v693
        %v695 = vpop.f32.mrf.mxu0
        %696 = vdwg.mxu0
        %v698 = vsel %vm475, %v656, 0
        %v701 = vsel %vm661, %v473, 0
        %703 = vmatpush.bf16.msra.mxu0 0
        %704 = vmatpush.bf16.msra.mxu0 0
        %705 = vmatpush.bf16.msra.mxu0 0
        %706 = vmatpush.bf16.msra.mxu0 0
        %707 = vmatpush.bf16.msra.mxu0 0
        %708 = vmatpush.bf16.msra.mxu0 0
        %709 = vmatpush.bf16.msra.mxu0 0
        %710 = vmatpush.bf16.msra.mxu0 %v701
        %711 = vmatmul.bf16.gmra.mxu0 %v698
        %v712 = vpop.f32.mrf.mxu0
        %v713 = vadd.f32 0.0, %v712
        %v714 = vpop.f32.mrf.mxu0
        %715 = vdwg.mxu0
        %v717 = vsel %vm475, %v657, 0
        %v720 = vsel %vm661, %v474, 0
        %722 = vmatpush.bf16.msra.mxu0 0
        %723 = vmatpush.bf16.msra.mxu0 0
        %724 = vmatpush.bf16.msra.mxu0 0
        %725 = vmatpush.bf16.msra.mxu0 0
        %726 = vmatpush.bf16.msra.mxu0 0
        %727 = vmatpush.bf16.msra.mxu0 0
        %728 = vmatpush.bf16.msra.mxu0 0
        %729 = vmatpush.bf16.msra.mxu0 %v720
        %730 = vmatmul.bf16.gmra.mxu0 %v717
        %v731 = vpop.f32.mrf.mxu0
        %v732 = vadd.f32 0.0, %v731
        %v733 = vpop.f32.mrf.mxu0
        %734 = vdwg.mxu0
        %v735 = vld [vmem:[#allocation4] sm:$0xff]
        %v736 = vld [vmem:[#allocation4 + $0x8] sm:$0xff]
        %v737 = vld [vmem:[#allocation4 + $0x10] sm:$0xff]
        %v738 = vld [vmem:[#allocation4 + $0x18] sm:$0xff]
        %740 = vset.pattern.permute.xlu0 0
        %741 = vperm.xlu0 %740, %v586
        %v742 = vpop.permute.xlu0 %741
        %745 = vset.pattern.permute.xlu0 0
        %746 = vperm.xlu0 %745, %v588
        %v747 = vpop.permute.xlu0 %746
        %750 = vset.pattern.permute.xlu0 0
        %751 = vperm.xlu0 %750, %v590
        %v752 = vpop.permute.xlu0 %751
        %755 = vset.pattern.permute.xlu0 0
        %756 = vperm.xlu0 %755, %v592
        %v757 = vpop.permute.xlu0 %756
        %v759 = vmul.f32 %v742, %v735
        %v760 = vmul.f32 %v747, %v736
        %v761 = vmul.f32 %v752, %v737
        %v762 = vmul.f32 %v757, %v738
        %v763 = vadd.f32 %v759, %v675
        %v764 = vadd.f32 %v760, %v694
        %v765 = vadd.f32 %v761, %v713
        %v766 = vadd.f32 %v762, %v732
        %767 = vst.msk [vmem:[#allocation4] sm:$0xff] %vm475, %v763
        %768 = vst.msk [vmem:[#allocation4 + $0x8] sm:$0xff] %vm475, %v764
        %769 = vst.msk [vmem:[#allocation4 + $0x10] sm:$0xff] %vm475, %v765
        %770 = vst.msk [vmem:[#allocation4 + $0x18] sm:$0xff] %vm475, %v766
        %771 = vst.msk [vmem:[#allocation2] sm:$0xff] %vm649, %v577
        %772 = vst.msk [vmem:[#allocation2 + $0x8] sm:$0xff] %vm649, %v578
        %773 = vst.msk [vmem:[#allocation2 + $0x10] sm:$0xff] %vm649, %v579
        %774 = vst.msk [vmem:[#allocation2 + $0x18] sm:$0xff] %vm649, %v580
        // Predicated region
        $region69: #{tpu_custom_call.1} parent=43 // pred_check
          %p775 = pneg %p445
        $region70: #{tpu_custom_call.1} parent=43 // pred_check_branch
          %777 = sbr.rel (%p775) target = $region72
        $region71: #{tpu_custom_call.1} parent=43 // pred_region
          %v778 = vld [vmem:[#allocation3] sm:$0xff]
          %v779 = vld [vmem:[#allocation3 + $0x8] sm:$0xff]
          %v780 = vld [vmem:[#allocation3 + $0x10] sm:$0xff]
          %v781 = vld [vmem:[#allocation3 + $0x18] sm:$0xff]
          %v782 = vrcp.pop %v778
          %v783 = vrcp.pop %v779
          %v784 = vrcp.pop %v780
          %v785 = vrcp.pop %v781
          %v786 = vld [vmem:[#allocation4] sm:$0xff]
          %v787 = vld [vmem:[#allocation4 + $0x8] sm:$0xff]
          %v788 = vld [vmem:[#allocation4 + $0x10] sm:$0xff]
          %v789 = vld [vmem:[#allocation4 + $0x18] sm:$0xff]
          %791 = vset.pattern.permute.xlu0 0
          %792 = vperm.xlu0 %791, %v782
          %v793 = vpop.permute.xlu0 %792
          %796 = vset.pattern.permute.xlu0 0
          %797 = vperm.xlu0 %796, %v783
          %v798 = vpop.permute.xlu0 %797
          %801 = vset.pattern.permute.xlu0 0
          %802 = vperm.xlu0 %801, %v784
          %v803 = vpop.permute.xlu0 %802
          %806 = vset.pattern.permute.xlu0 0
          %807 = vperm.xlu0 %806, %v785
          %v808 = vpop.permute.xlu0 %807
          %v810 = vmul.f32 %v786, %v793
          %v811 = vmul.f32 %v787, %v798
          %v812 = vmul.f32 %v788, %v803
          %v813 = vmul.f32 %v789, %v808
          %814 = vst.msk [vmem:[#allocation5] sm:$0xff] %vm475, %v810
          %816 = vrot.lane.b32.xlu0 %v811, 8
          %v817 = vpop.permute.xlu0 %816
          %vm819 = vcmask 130112
          %820 = vst.msk [vmem:[#allocation5] sm:$0xff] %vm819, %v817
          %822 = vrot.lane.b32.xlu0 %v812, 16
          %v823 = vpop.permute.xlu0 %822
          %vm825 = vcmask 195712
          %826 = vst.msk [vmem:[#allocation5] sm:$0xff] %vm825, %v823
          %828 = vrot.lane.b32.xlu0 %v813, 24
          %v829 = vpop.permute.xlu0 %828
          %vm831 = vcmask 261312
          %832 = vst.msk [vmem:[#allocation5] sm:$0xff] %vm831, %v829
          %v833 = vld [vmem:[#allocation5] sm:$0xff]
          %v834 = vpack.c.bf16 %v833, %v833
          %v835 = vld [vmem:[#allocation14] sm:$0xf]
          %v836 = vld [vmem:[#allocation14 + $0x4] sm:$0xf]
          %v837 = vld [vmem:[#allocation14 + $0x8] sm:$0xf]
          %v838 = vld [vmem:[#allocation14 + $0xc] sm:$0xf]
          %v839 = vld [vmem:[%s5] sm:$0x1]
          %v841 = vperm.slane %v839, 0
          %v847 = vunpack.c.l.b16 %v835
          %v848 = vunpack.c.l.b16 %v836
          %v849 = vunpack.c.l.b16 %v837
          %v850 = vunpack.c.l.b16 %v838
          %v851 = vpack.c.b16 %v848, %v847
          %v852 = vpack.c.b16 %v850, %v849
          %vm855 = vcmask 261120
          %v857 = vsel %vm855, %v834, 0
          %859 = vmatpush.bf16.msra.mxu0 0
          %860 = vmatpush.bf16.msra.mxu0 0
          %861 = vmatpush.bf16.msra.mxu0 0
          %862 = vmatpush.bf16.msra.mxu0 0
          %863 = vmatpush.bf16.msra.mxu0 0
          %864 = vmatpush.bf16.msra.mxu0 0
          %865 = vmatpush.bf16.msra.mxu0 %v852
          %866 = vmatpush.bf16.msra.mxu0 %v851
          %867 = vmatmul.bf16.gmra.mxu0 %v857
          %v868 = vpop.f32.mrf.mxu0
          %v869 = vadd.f32 %v841, %v868
          %v870 = vpop.f32.mrf.mxu0
          %871 = vdwg.mxu0
          %872 = vst [vmem:[%s443] sm:$0xff] %v869
        $region72: #{tpu_custom_call.1} parent=43 // pred_fallthru
          _
        %s873 = sand.u32 %s214, 1
        %s874 = scalar_lea.sflag [#allocation8], %s873
        %s875 = sand.u32 %s214, 1
        %s876 = smul.addr %s875, 8
        %s877 = scalar_lea.vmem [#allocation15], %s876
        // Predicated region
        $region73: #{tpu_custom_call.1} parent=43 // pred_check
          %p878 = pneg %p224
        $region74: #{tpu_custom_call.1} parent=43 // pred_check_branch
          %880 = sbr.rel (%p878) target = $region76
        $region75: #{tpu_custom_call.1} parent=43 // pred_region
          %882 = vsyncadd %s874, 0
          %s883 = sadd.s32 %s35, %s34
          %s884 = smul.addr %s883, 8
          %s885 = scalar_lea.hbm %s6, %s884
          %s887 = sshll.u32 %s877, 4
          %s888 = int_to_ptr.vmem [resolvable:$true] %s887
          %s889 = sshll.u32 %s885, 4
          %s890 = int_to_ptr.hbm [resolvable:$true] %s889
          %892 = dma.vmem_to_hbm [thread:$0]  %s888, 128, %s890, %s874
        $region76: #{tpu_custom_call.1} parent=43 // pred_fallthru
          _
      $region44: #{tpu_custom_call.1} parent=5 // pred_fallthru
        _
      %p893 = scmp.le.s32.totalorder 2, %s24
      // Predicated region
      $region77: #{tpu_custom_call.1} parent=5 // pred_check
        %p894 = pneg %p893
      $region78: #{tpu_custom_call.1} parent=5 // pred_check_branch
        %896 = sbr.rel (%p894) target = $region80
      $region79: #{tpu_custom_call.1} parent=5 // pred_region
        %s897 = ssub.s32 %s24, 2
        // Predicated region
        $region81: #{tpu_custom_call.1} parent=79 // pred_check
          %p898 = pneg %p230
        $region82: #{tpu_custom_call.1} parent=79 // pred_check_branch
          %900 = sbr.rel (%p898) target = $region84
        $region83: #{tpu_custom_call.1} parent=79 // pred_region
          %s901 = sand.u32 %s215, 1
          %s902 = scalar_lea.sflag [#allocation8], %s901
          %s903 = sand.u32 %s215, 1
          %s904 = smul.addr %s903, 8
          %s905 = scalar_lea.vmem [#allocation15], %s904
          %907 = dma.done %s902, 128
        $region84: #{tpu_custom_call.1} parent=79 // pred_fallthru
          _
      $region80: #{tpu_custom_call.1} parent=5 // pred_fallthru
        _
    $region6: #{tpu_custom_call.1} parent=1 // loop_footer
      %s28 = sadd.s32 1, %s24
    $region7: #{tpu_custom_call.1} parent=1 // loop_footer_branch
      %23 = sbr.rel target = $region3
    $region8: #{tpu_custom_call.1} parent=1 // loop_exit
      _
    %908 = vsyncpa [#allocation7], 1
    %s909 = scalar_lea.sflag [#allocation7], 1
    %910 = vsyncpa %s909, 1
    %911 = vsyncpa [#allocation10], 1
    %s912 = scalar_lea.sflag [#allocation10], 1
    %913 = vsyncpa %s912, 1
    %914 = vsyncpa [#allocation13], 1
    %s915 = scalar_lea.sflag [#allocation13], 1
    %916 = vsyncpa %s915, 1
    %917 = vsyncpa [#allocation8], 1
    %s918 = scalar_lea.sflag [#allocation8], 1
    %919 = vsyncpa %s918, 1

</llo_original>
